<compile_context>
chip_gen: v7x
topology: tpu7x:2x2x1
jax: 0.10.0
libtpu: 0.0.40
codegen_flags: <defaults>
</compile_context>

<pallas_src>
import functools

import jax
import jax.numpy as jnp
from jax.experimental import pallas as pl
from jax.experimental.pallas import tpu as pltpu


def _tversky_loss_kernel(x_ref, lab_ref, out_ref, *, cls_offset, denom,
                         batch_dice, smooth, a_const, b_const):
    """Whole-problem kernel: (B, C, S) probs + (B, 1, S) int labels -> scalar.

    Builds the one-hot mask in-register, reduces TP / Sx / Sy over the spatial
    (lane) axis, derives FP / FN, and computes the Tversky dice loss scalar.
    """
    x = x_ref[...]                                        # (B, C, S) float32
    lab = lab_ref[...]                                    # (B, 1, S) int32

    # One-hot mask without HBM traffic: compare labels against class-id iota
    # along the class (sublane) axis.  cls_offset accounts for do_bg=False.
    cls = jax.lax.broadcasted_iota(jnp.int32, x.shape, 1) + cls_offset
    mask = (lab == cls).astype(jnp.float32)               # (B, C, S)

    # Spatial reductions (lane axis). Only one multiply per element.
    tp = jnp.sum(x * mask, axis=-1) / denom               # (B, C)
    sx = jnp.sum(x, axis=-1) / denom                      # (B, C)
    sy = jnp.sum(mask, axis=-1) / denom                   # (B, C)
    fp = sx - tp                                          # sum(x*(1-y))/denom
    fn = sy - tp                                          # sum((1-x)*y)/denom

    if batch_dice:
        tp = jnp.sum(tp, axis=0, keepdims=True)
        fp = jnp.sum(fp, axis=0, keepdims=True)
        fn = jnp.sum(fn, axis=0, keepdims=True)

    adaptive_a = a_const + b_const * ((fp + smooth) / (fp + fn + smooth))
    adaptive_b = a_const + b_const * ((fn + smooth) / (fp + fn + smooth))
    dc = (tp + smooth) / (tp + adaptive_a * fp + adaptive_b * fn + smooth)

    # mean over all entries, kept rank-2 throughout; single (1,1) store.
    n = dc.shape[0] * dc.shape[1]
    dc_sum = jnp.sum(jnp.sum(dc, axis=1, keepdims=True), axis=0, keepdims=True)
    out_ref[...] = -(dc_sum / n)


@functools.partial(jax.jit, static_argnames=("batch_dice", "do_bg"))
def tversky_dice_loss(x, y, *, batch_dice=False, do_bg=True):
    """Forward of TverskyDiceLoss (apply_nonlin=None, loss_mask=None).

    x: (B, C, D, H, W) float32 probabilities
    y: (B, 1, D, H, W) int class labels in [0, C)
    Returns scalar loss = -dc (spatial size < 32, i.e. the non-pooled branch).
    """
    B, C, D, H, W = x.shape
    assert W < 32, "only the shp_x[-1] < 32 branch is implemented"

    denom = float(W) ** 3  # matches `pow(shp_x[-1], 3)` in the reference
                           # (NOT D*H*W for non-cubic volumes, by design)

    cls_offset = 0
    if not do_bg:
        x = x[:, 1:]
        C = C - 1
        cls_offset = 1     # remaining channels correspond to classes 1..C

    S = D * H * W
    x_r = x.reshape(B, C, S).astype(jnp.float32)           # (B, C, S)
    lab_r = y.reshape(B, 1, S).astype(jnp.int32)            # (B, 1, S)

    kernel = functools.partial(
        _tversky_loss_kernel,
        cls_offset=cls_offset, denom=denom, batch_dice=batch_dice,
        smooth=1e-08, a_const=0.3, b_const=0.4)

    out = pl.pallas_call(
        kernel,
        out_shape=jax.ShapeDtypeStruct((1, 1), jnp.float32),
        in_specs=[
            pl.BlockSpec(memory_space=pltpu.MemorySpace.VMEM),
            pl.BlockSpec(memory_space=pltpu.MemorySpace.VMEM),
        ],
        out_specs=pl.BlockSpec(memory_space=pltpu.MemorySpace.VMEM),
    )(x_r, lab_r)
    return out[0, 0]


def _reference_loss(x, y, *, batch_dice=False, do_bg=True):
    """Pure-JAX reference (mirrors the PyTorch math) for a sanity check."""
    B, C, D, H, W = x.shape
    y_onehot = jax.nn.one_hot(y[:, 0], C, axis=1, dtype=jnp.float32)
    if not do_bg:
        x = x[:, 1:]
        y_onehot = y_onehot[:, 1:]
    axes = (2, 3, 4)
    denom = W ** 3
    intersect = (x * y_onehot).sum(axes) / denom
    fp = (x * (1.0 - y_onehot)).sum(axes) / denom
    fn = ((1.0 - x) * y_onehot).sum(axes) / denom
    if batch_dice:
        intersect, fp, fn = intersect.sum(0), fp.sum(0), fn.sum(0)
    smooth = 1e-08
    a = 0.3 + 0.4 * ((fp + smooth) / (fp + fn + smooth))
    b = 0.3 + 0.4 * ((fn + smooth) / (fp + fn + smooth))
    dc = (intersect + smooth) / (intersect + a * fp + b * fn + smooth)
    return -dc.mean()


if __name__ == "__main__":
    key = jax.random.PRNGKey(0)
    k_x, k_y = jax.random.split(key)

    Bsz, Cch, Dd, Hh, Ww = 2, 4, 16, 16, 16   # spatial < 32 -> non-pooled branch
    logits = jax.random.normal(k_x, (Bsz, Cch, Dd, Hh, Ww), dtype=jnp.float32)
    x = jax.nn.softmax(logits, axis=1)          # probabilities (nonlin is glue)
    y = jax.random.randint(k_y, (Bsz, 1, Dd, Hh, Ww), 0, Cch, dtype=jnp.int32)

    for bd, bg in ((False, True), (True, True), (False, False)):
        loss = jax.block_until_ready(tversky_dice_loss(x, y, batch_dice=bd, do_bg=bg))
        ref = jax.block_until_ready(_reference_loss(x, y, batch_dice=bd, do_bg=bg))
        assert jnp.allclose(loss, ref, rtol=1e-5, atol=1e-5), (bd, bg, loss, ref)

    print("KERNEL_OK")
</pallas_src>

<mosaic_0001>
module attributes {stable_mosaic.version = 11 : i64} {
  func.func @_tversky_loss_kernel(%arg0: memref<2x4x4096xf32, #tpu.memory_space<vmem>>, %arg1: memref<2x1x4096xi32, #tpu.memory_space<vmem>>, %arg2: memref<1x1xf32, #tpu.memory_space<vmem>>) attributes {dimension_semantics = [], scalar_prefetch = 0 : i64, scratch_operands = 0 : i64, tpu.core_type = #tpu.core_type<tc>} {
    %c0 = arith.constant 0 : index
    %c0_0 = arith.constant 0 : index
    %c0_1 = arith.constant 0 : index
    %0 = vector.load %arg0[%c0, %c0_0, %c0_1] : memref<2x4x4096xf32, #tpu.memory_space<vmem>>, vector<2x4x4096xf32>
    %c0_2 = arith.constant 0 : index
    %c0_3 = arith.constant 0 : index
    %c0_4 = arith.constant 0 : index
    %1 = vector.load %arg1[%c0_2, %c0_3, %c0_4] : memref<2x1x4096xi32, #tpu.memory_space<vmem>>, vector<2x1x4096xi32>
    %2 = tpu.iota {dimensions = array<i32: 1>} : vector<2x4x4096xi32>
    %c0_i32 = arith.constant 0 : i32
    %3 = vector.broadcast %c0_i32 : i32 to vector<2x4x4096xi32>
    %4 = arith.addi %2, %3 : vector<2x4x4096xi32>
    %5 = vector.broadcast %1 : vector<2x1x4096xi32> to vector<2x4x4096xi32>
    %6 = arith.cmpi eq, %5, %4 : vector<2x4x4096xi32>
    %7 = arith.extui %6 : vector<2x4x4096xi1> to vector<2x4x4096xi32>
    %8 = arith.sitofp %7 : vector<2x4x4096xi32> to vector<2x4x4096xf32>
    %9 = arith.mulf %0, %8 : vector<2x4x4096xf32>
    %cst = arith.constant dense<0.000000e+00> : vector<2x4xf32>
    %10 = vector.multi_reduction <add>, %9, %cst [2] : vector<2x4x4096xf32> to vector<2x4xf32>
    %cst_5 = arith.constant 4.096000e+03 : f32
    %11 = vector.broadcast %cst_5 : f32 to vector<2x4xf32>
    %12 = arith.divf %10, %11 : vector<2x4xf32>
    %cst_6 = arith.constant dense<0.000000e+00> : vector<2x4xf32>
    %13 = vector.multi_reduction <add>, %0, %cst_6 [2] : vector<2x4x4096xf32> to vector<2x4xf32>
    %cst_7 = arith.constant 4.096000e+03 : f32
    %14 = vector.broadcast %cst_7 : f32 to vector<2x4xf32>
    %15 = arith.divf %13, %14 : vector<2x4xf32>
    %cst_8 = arith.constant dense<0.000000e+00> : vector<2x4xf32>
    %16 = vector.multi_reduction <add>, %8, %cst_8 [2] : vector<2x4x4096xf32> to vector<2x4xf32>
    %cst_9 = arith.constant 4.096000e+03 : f32
    %17 = vector.broadcast %cst_9 : f32 to vector<2x4xf32>
    %18 = arith.divf %16, %17 : vector<2x4xf32>
    %19 = arith.subf %15, %12 : vector<2x4xf32>
    %20 = arith.subf %18, %12 : vector<2x4xf32>
    %cst_10 = arith.constant 9.99999993E-9 : f32
    %21 = vector.broadcast %cst_10 : f32 to vector<2x4xf32>
    %22 = arith.addf %19, %21 : vector<2x4xf32>
    %23 = arith.addf %19, %20 : vector<2x4xf32>
    %cst_11 = arith.constant 9.99999993E-9 : f32
    %24 = vector.broadcast %cst_11 : f32 to vector<2x4xf32>
    %25 = arith.addf %23, %24 : vector<2x4xf32>
    %26 = arith.divf %22, %25 : vector<2x4xf32>
    %cst_12 = arith.constant 4.000000e-01 : f32
    %27 = vector.broadcast %cst_12 : f32 to vector<2x4xf32>
    %28 = arith.mulf %27, %26 : vector<2x4xf32>
    %cst_13 = arith.constant 3.000000e-01 : f32
    %29 = vector.broadcast %cst_13 : f32 to vector<2x4xf32>
    %30 = arith.addf %29, %28 : vector<2x4xf32>
    %cst_14 = arith.constant 9.99999993E-9 : f32
    %31 = vector.broadcast %cst_14 : f32 to vector<2x4xf32>
    %32 = arith.addf %20, %31 : vector<2x4xf32>
    %33 = arith.addf %19, %20 : vector<2x4xf32>
    %cst_15 = arith.constant 9.99999993E-9 : f32
    %34 = vector.broadcast %cst_15 : f32 to vector<2x4xf32>
    %35 = arith.addf %33, %34 : vector<2x4xf32>
    %36 = arith.divf %32, %35 : vector<2x4xf32>
    %cst_16 = arith.constant 4.000000e-01 : f32
    %37 = vector.broadcast %cst_16 : f32 to vector<2x4xf32>
    %38 = arith.mulf %37, %36 : vector<2x4xf32>
    %cst_17 = arith.constant 3.000000e-01 : f32
    %39 = vector.broadcast %cst_17 : f32 to vector<2x4xf32>
    %40 = arith.addf %39, %38 : vector<2x4xf32>
    %cst_18 = arith.constant 9.99999993E-9 : f32
    %41 = vector.broadcast %cst_18 : f32 to vector<2x4xf32>
    %42 = arith.addf %12, %41 : vector<2x4xf32>
    %43 = arith.mulf %30, %19 : vector<2x4xf32>
    %44 = arith.addf %12, %43 : vector<2x4xf32>
    %45 = arith.mulf %40, %20 : vector<2x4xf32>
    %46 = arith.addf %44, %45 : vector<2x4xf32>
    %cst_19 = arith.constant 9.99999993E-9 : f32
    %47 = vector.broadcast %cst_19 : f32 to vector<2x4xf32>
    %48 = arith.addf %46, %47 : vector<2x4xf32>
    %49 = arith.divf %42, %48 : vector<2x4xf32>
    %cst_20 = arith.constant dense<0.000000e+00> : vector<2xf32>
    %50 = vector.multi_reduction <add>, %49, %cst_20 [1] : vector<2x4xf32> to vector<2xf32>
    %51 = vector.shape_cast %50 : vector<2xf32> to vector<2x1xf32>
    %cst_21 = arith.constant dense<0.000000e+00> : vector<1xf32>
    %52 = vector.multi_reduction <add>, %51, %cst_21 [0] : vector<2x1xf32> to vector<1xf32>
    %53 = vector.shape_cast %52 : vector<1xf32> to vector<1x1xf32>
    %cst_22 = arith.constant 8.000000e+00 : f32
    %54 = vector.broadcast %cst_22 : f32 to vector<1x1xf32>
    %55 = arith.divf %53, %54 : vector<1x1xf32>
    %cst_23 = arith.constant 0.000000e+00 : f32
    %56 = vector.broadcast %cst_23 : f32 to vector<1x1xf32>
    %57 = arith.subf %56, %55 : vector<1x1xf32>
    %c0_24 = arith.constant 0 : index
    %c0_25 = arith.constant 0 : index
    %58 = vector.load %arg2[%c0_24, %c0_25] : memref<1x1xf32, #tpu.memory_space<vmem>>, vector<1x1xf32>
    tpu.vector_store %arg2[%c0_24, %c0_25], %57 {strides = array<i32>} : memref<1x1xf32, #tpu.memory_space<vmem>>, vector<1x1xf32>,
    return
  }
}

</mosaic_0001>

<llo_original>
// kernel: tversky_dice_loss.1
$region0: #{tversky_dice_loss.1}
  #allocation0 [shape = 'u32[]', space=smem, size = 0x4, offset = 0x4, fixed_abs, tag = 'smem constant byte address 0x4 - core index']
  #allocation1 [shape = 'u32[144,128]{1,0:T(1,128)}', space=vmem, size = 0x12000, scoped, tag = 'internal scratch']
  %s0 = inlined_call_operand.vmem [shape: f32[2,4,4096], index: 0, kind: input, shape index: {}]
  %s1 = inlined_call_operand.vmem [shape: s32[2,1,4096], index: 1, kind: input, shape index: {}]
  %s2 = inlined_call_operand.hbm [shape: f32[1,1], index: 2, kind: output, shape index: {}]
  %s3 = sld [smem:[#allocation0]]
  $region18: #{tversky_dice_loss.1} parent=0
    _
  %s5 = ssub.s32 1, %s3
  %s6 = scalar_select 0, %s5, %s3
  $region1: #{tversky_dice_loss.1} parent=0
    #allocation2 [shape = 'u8[512]{0}', space=vmem, size = 0x400, scoped, tag = 'output window, operand 0, single buffered']
    #allocation3 [shape = 's32[1]{0}', space=sflag, size = 0x4, scoped, tag = 'scoped memory for tversky_dice_loss.1']
    %7 = vsyncpa [#allocation3], 0
    // Predicated region
    $region2: #{tversky_dice_loss.1} parent=1 // pred_check
      _
    $region3: #{tversky_dice_loss.1} parent=1 // pred_check_branch
      %9 = sbr.rel (0) target = $region5
    $region4: #{tversky_dice_loss.1} parent=1 // pred_region
      _
    $region5: #{tversky_dice_loss.1} parent=1 // pred_fallthru
      _
    // Predicated region
    $region6: #{tversky_dice_loss.1} parent=1 // pred_check
      _
    $region7: #{tversky_dice_loss.1} parent=1 // pred_check_branch
      %11 = sbr.rel (0) target = $region9
    $region8: #{tversky_dice_loss.1} parent=1 // pred_region
      _
    $region9: #{tversky_dice_loss.1} parent=1 // pred_fallthru
      _
    %v12 = vld [vmem:[%s0] sm:$0xff]
    %v13 = vld [vmem:[%s0 + $0x8] sm:$0xff]
    %v14 = vld [vmem:[%s0 + $0x10] sm:$0xff]
    %v15 = vld [vmem:[%s0 + $0x18] sm:$0xff]
    %v16 = vld [vmem:[%s0 + $0x20] sm:$0xff]
    %v17 = vld [vmem:[%s0 + $0x28] sm:$0xff]
    %v18 = vld [vmem:[%s0 + $0x30] sm:$0xff]
    %v19 = vld [vmem:[%s0 + $0x38] sm:$0xff]
    %v20 = vld [vmem:[%s0 + $0x40] sm:$0xff]
    %v21 = vld [vmem:[%s0 + $0x48] sm:$0xff]
    %v22 = vld [vmem:[%s0 + $0x50] sm:$0xff]
    %v23 = vld [vmem:[%s0 + $0x58] sm:$0xff]
    %v24 = vld [vmem:[%s0 + $0x60] sm:$0xff]
    %v25 = vld [vmem:[%s0 + $0x68] sm:$0xff]
    %v26 = vld [vmem:[%s0 + $0x70] sm:$0xff]
    %v27 = vld [vmem:[%s0 + $0x78] sm:$0xff]
    %v28 = vld [vmem:[%s0 + $0x80] sm:$0xff]
    %v29 = vld [vmem:[%s0 + $0x88] sm:$0xff]
    %v30 = vld [vmem:[%s0 + $0x90] sm:$0xff]
    %v31 = vld [vmem:[%s0 + $0x98] sm:$0xff]
    %v32 = vld [vmem:[%s0 + $0xa0] sm:$0xff]
    %v33 = vld [vmem:[%s0 + $0xa8] sm:$0xff]
    %v34 = vld [vmem:[%s0 + $0xb0] sm:$0xff]
    %v35 = vld [vmem:[%s0 + $0xb8] sm:$0xff]
    %v36 = vld [vmem:[%s0 + $0xc0] sm:$0xff]
    %v37 = vld [vmem:[%s0 + $0xc8] sm:$0xff]
    %v38 = vld [vmem:[%s0 + $0xd0] sm:$0xff]
    %v39 = vld [vmem:[%s0 + $0xd8] sm:$0xff]
    %v40 = vld [vmem:[%s0 + $0xe0] sm:$0xff]
    %v41 = vld [vmem:[%s0 + $0xe8] sm:$0xff]
    %v42 = vld [vmem:[%s0 + $0xf0] sm:$0xff]
    %v43 = vld [vmem:[%s0 + $0xf8] sm:$0xff]
    %v44 = vld [vmem:[%s1] sm:$0xff]
    %v45 = vld [vmem:[%s1 + $0x8] sm:$0xff]
    %v46 = vld [vmem:[%s1 + $0x10] sm:$0xff]
    %v47 = vld [vmem:[%s1 + $0x18] sm:$0xff]
    %v48 = vld [vmem:[%s1 + $0x20] sm:$0xff]
    %v49 = vld [vmem:[%s1 + $0x28] sm:$0xff]
    %v50 = vld [vmem:[%s1 + $0x30] sm:$0xff]
    %v51 = vld [vmem:[%s1 + $0x38] sm:$0xff]
    %v52 = vlaneseq
    %v53 = vshrl.u32 %v52, 7
    %v54 = vlaneseq
    %v55 = vshrl.u32 %v54, 7
    %v56 = vsub.s32 0, %v55
    %v57 = vrot.slane %v44, %v56
    %v58 = vlaneseq
    %v59 = vshrl.u32 %v58, 7
    %v60 = vsub.s32 1, %v59
    %v61 = vrot.slane %v44, %v60
    %v62 = vlaneseq
    %v63 = vshrl.u32 %v62, 7
    %v64 = vsub.s32 2, %v63
    %v65 = vrot.slane %v44, %v64
    %v66 = vlaneseq
    %v67 = vshrl.u32 %v66, 7
    %v68 = vsub.s32 3, %v67
    %v69 = vrot.slane %v44, %v68
    %v70 = vlaneseq
    %v71 = vshrl.u32 %v70, 7
    %v72 = vsub.s32 4, %v71
    %v73 = vrot.slane %v44, %v72
    %v74 = vlaneseq
    %v75 = vshrl.u32 %v74, 7
    %v76 = vsub.s32 5, %v75
    %v77 = vrot.slane %v44, %v76
    %v78 = vlaneseq
    %v79 = vshrl.u32 %v78, 7
    %v80 = vsub.s32 6, %v79
    %v81 = vrot.slane %v44, %v80
    %v82 = vlaneseq
    %v83 = vshrl.u32 %v82, 7
    %v84 = vsub.s32 7, %v83
    %v85 = vrot.slane %v44, %v84
    %v86 = vlaneseq
    %v87 = vshrl.u32 %v86, 7
    %v88 = vsub.s32 0, %v87
    %v89 = vrot.slane %v45, %v88
    %v90 = vlaneseq
    %v91 = vshrl.u32 %v90, 7
    %v92 = vsub.s32 1, %v91
    %v93 = vrot.slane %v45, %v92
    %v94 = vlaneseq
    %v95 = vshrl.u32 %v94, 7
    %v96 = vsub.s32 2, %v95
    %v97 = vrot.slane %v45, %v96
    %v98 = vlaneseq
    %v99 = vshrl.u32 %v98, 7
    %v100 = vsub.s32 3, %v99
    %v101 = vrot.slane %v45, %v100
    %v102 = vlaneseq
    %v103 = vshrl.u32 %v102, 7
    %v104 = vsub.s32 4, %v103
    %v105 = vrot.slane %v45, %v104
    %v106 = vlaneseq
    %v107 = vshrl.u32 %v106, 7
    %v108 = vsub.s32 5, %v107
    %v109 = vrot.slane %v45, %v108
    %v110 = vlaneseq
    %v111 = vshrl.u32 %v110, 7
    %v112 = vsub.s32 6, %v111
    %v113 = vrot.slane %v45, %v112
    %v114 = vlaneseq
    %v115 = vshrl.u32 %v114, 7
    %v116 = vsub.s32 7, %v115
    %v117 = vrot.slane %v45, %v116
    %v118 = vlaneseq
    %v119 = vshrl.u32 %v118, 7
    %v120 = vsub.s32 0, %v119
    %v121 = vrot.slane %v46, %v120
    %v122 = vlaneseq
    %v123 = vshrl.u32 %v122, 7
    %v124 = vsub.s32 1, %v123
    %v125 = vrot.slane %v46, %v124
    %v126 = vlaneseq
    %v127 = vshrl.u32 %v126, 7
    %v128 = vsub.s32 2, %v127
    %v129 = vrot.slane %v46, %v128
    %v130 = vlaneseq
    %v131 = vshrl.u32 %v130, 7
    %v132 = vsub.s32 3, %v131
    %v133 = vrot.slane %v46, %v132
    %v134 = vlaneseq
    %v135 = vshrl.u32 %v134, 7
    %v136 = vsub.s32 4, %v135
    %v137 = vrot.slane %v46, %v136
    %v138 = vlaneseq
    %v139 = vshrl.u32 %v138, 7
    %v140 = vsub.s32 5, %v139
    %v141 = vrot.slane %v46, %v140
    %v142 = vlaneseq
    %v143 = vshrl.u32 %v142, 7
    %v144 = vsub.s32 6, %v143
    %v145 = vrot.slane %v46, %v144
    %v146 = vlaneseq
    %v147 = vshrl.u32 %v146, 7
    %v148 = vsub.s32 7, %v147
    %v149 = vrot.slane %v46, %v148
    %v150 = vlaneseq
    %v151 = vshrl.u32 %v150, 7
    %v152 = vsub.s32 0, %v151
    %v153 = vrot.slane %v47, %v152
    %v154 = vlaneseq
    %v155 = vshrl.u32 %v154, 7
    %v156 = vsub.s32 1, %v155
    %v157 = vrot.slane %v47, %v156
    %v158 = vlaneseq
    %v159 = vshrl.u32 %v158, 7
    %v160 = vsub.s32 2, %v159
    %v161 = vrot.slane %v47, %v160
    %v162 = vlaneseq
    %v163 = vshrl.u32 %v162, 7
    %v164 = vsub.s32 3, %v163
    %v165 = vrot.slane %v47, %v164
    %v166 = vlaneseq
    %v167 = vshrl.u32 %v166, 7
    %v168 = vsub.s32 4, %v167
    %v169 = vrot.slane %v47, %v168
    %v170 = vlaneseq
    %v171 = vshrl.u32 %v170, 7
    %v172 = vsub.s32 5, %v171
    %v173 = vrot.slane %v47, %v172
    %v174 = vlaneseq
    %v175 = vshrl.u32 %v174, 7
    %v176 = vsub.s32 6, %v175
    %v177 = vrot.slane %v47, %v176
    %v178 = vlaneseq
    %v179 = vshrl.u32 %v178, 7
    %v180 = vsub.s32 7, %v179
    %v181 = vrot.slane %v47, %v180
    %v182 = vlaneseq
    %v183 = vshrl.u32 %v182, 7
    %v184 = vsub.s32 0, %v183
    %v185 = vrot.slane %v48, %v184
    %v186 = vlaneseq
    %v187 = vshrl.u32 %v186, 7
    %v188 = vsub.s32 1, %v187
    %v189 = vrot.slane %v48, %v188
    %v190 = vlaneseq
    %v191 = vshrl.u32 %v190, 7
    %v192 = vsub.s32 2, %v191
    %v193 = vrot.slane %v48, %v192
    %v194 = vlaneseq
    %v195 = vshrl.u32 %v194, 7
    %v196 = vsub.s32 3, %v195
    %v197 = vrot.slane %v48, %v196
    %v198 = vlaneseq
    %v199 = vshrl.u32 %v198, 7
    %v200 = vsub.s32 4, %v199
    %v201 = vrot.slane %v48, %v200
    %v202 = vlaneseq
    %v203 = vshrl.u32 %v202, 7
    %v204 = vsub.s32 5, %v203
    %v205 = vrot.slane %v48, %v204
    %v206 = vlaneseq
    %v207 = vshrl.u32 %v206, 7
    %v208 = vsub.s32 6, %v207
    %v209 = vrot.slane %v48, %v208
    %v210 = vlaneseq
    %v211 = vshrl.u32 %v210, 7
    %v212 = vsub.s32 7, %v211
    %v213 = vrot.slane %v48, %v212
    %v214 = vlaneseq
    %v215 = vshrl.u32 %v214, 7
    %v216 = vsub.s32 0, %v215
    %v217 = vrot.slane %v49, %v216
    %v218 = vlaneseq
    %v219 = vshrl.u32 %v218, 7
    %v220 = vsub.s32 1, %v219
    %v221 = vrot.slane %v49, %v220
    %v222 = vlaneseq
    %v223 = vshrl.u32 %v222, 7
    %v224 = vsub.s32 2, %v223
    %v225 = vrot.slane %v49, %v224
    %v226 = vlaneseq
    %v227 = vshrl.u32 %v226, 7
    %v228 = vsub.s32 3, %v227
    %v229 = vrot.slane %v49, %v228
    %v230 = vlaneseq
    %v231 = vshrl.u32 %v230, 7
    %v232 = vsub.s32 4, %v231
    %v233 = vrot.slane %v49, %v232
    %v234 = vlaneseq
    %v235 = vshrl.u32 %v234, 7
    %v236 = vsub.s32 5, %v235
    %v237 = vrot.slane %v49, %v236
    %v238 = vlaneseq
    %v239 = vshrl.u32 %v238, 7
    %v240 = vsub.s32 6, %v239
    %v241 = vrot.slane %v49, %v240
    %v242 = vlaneseq
    %v243 = vshrl.u32 %v242, 7
    %v244 = vsub.s32 7, %v243
    %v245 = vrot.slane %v49, %v244
    %v246 = vlaneseq
    %v247 = vshrl.u32 %v246, 7
    %v248 = vsub.s32 0, %v247
    %v249 = vrot.slane %v50, %v248
    %v250 = vlaneseq
    %v251 = vshrl.u32 %v250, 7
    %v252 = vsub.s32 1, %v251
    %v253 = vrot.slane %v50, %v252
    %v254 = vlaneseq
    %v255 = vshrl.u32 %v254, 7
    %v256 = vsub.s32 2, %v255
    %v257 = vrot.slane %v50, %v256
    %v258 = vlaneseq
    %v259 = vshrl.u32 %v258, 7
    %v260 = vsub.s32 3, %v259
    %v261 = vrot.slane %v50, %v260
    %v262 = vlaneseq
    %v263 = vshrl.u32 %v262, 7
    %v264 = vsub.s32 4, %v263
    %v265 = vrot.slane %v50, %v264
    %v266 = vlaneseq
    %v267 = vshrl.u32 %v266, 7
    %v268 = vsub.s32 5, %v267
    %v269 = vrot.slane %v50, %v268
    %v270 = vlaneseq
    %v271 = vshrl.u32 %v270, 7
    %v272 = vsub.s32 6, %v271
    %v273 = vrot.slane %v50, %v272
    %v274 = vlaneseq
    %v275 = vshrl.u32 %v274, 7
    %v276 = vsub.s32 7, %v275
    %v277 = vrot.slane %v50, %v276
    %v278 = vlaneseq
    %v279 = vshrl.u32 %v278, 7
    %v280 = vsub.s32 0, %v279
    %v281 = vrot.slane %v51, %v280
    %v282 = vlaneseq
    %v283 = vshrl.u32 %v282, 7
    %v284 = vsub.s32 1, %v283
    %v285 = vrot.slane %v51, %v284
    %v286 = vlaneseq
    %v287 = vshrl.u32 %v286, 7
    %v288 = vsub.s32 2, %v287
    %v289 = vrot.slane %v51, %v288
    %v290 = vlaneseq
    %v291 = vshrl.u32 %v290, 7
    %v292 = vsub.s32 3, %v291
    %v293 = vrot.slane %v51, %v292
    %v294 = vlaneseq
    %v295 = vshrl.u32 %v294, 7
    %v296 = vsub.s32 4, %v295
    %v297 = vrot.slane %v51, %v296
    %v298 = vlaneseq
    %v299 = vshrl.u32 %v298, 7
    %v300 = vsub.s32 5, %v299
    %v301 = vrot.slane %v51, %v300
    %v302 = vlaneseq
    %v303 = vshrl.u32 %v302, 7
    %v304 = vsub.s32 6, %v303
    %v305 = vrot.slane %v51, %v304
    %v306 = vlaneseq
    %v307 = vshrl.u32 %v306, 7
    %v308 = vsub.s32 7, %v307
    %v309 = vrot.slane %v51, %v308
    %vm310 = vcmp.eq.s32.totalorder %v57, %v53
    %vm311 = vcmp.eq.s32.totalorder %v61, %v53
    %vm312 = vcmp.eq.s32.totalorder %v65, %v53
    %vm313 = vcmp.eq.s32.totalorder %v69, %v53
    %vm314 = vcmp.eq.s32.totalorder %v73, %v53
    %vm315 = vcmp.eq.s32.totalorder %v77, %v53
    %vm316 = vcmp.eq.s32.totalorder %v81, %v53
    %vm317 = vcmp.eq.s32.totalorder %v85, %v53
    %vm318 = vcmp.eq.s32.totalorder %v89, %v53
    %vm319 = vcmp.eq.s32.totalorder %v93, %v53
    %vm320 = vcmp.eq.s32.totalorder %v97, %v53
    %vm321 = vcmp.eq.s32.totalorder %v101, %v53
    %vm322 = vcmp.eq.s32.totalorder %v105, %v53
    %vm323 = vcmp.eq.s32.totalorder %v109, %v53
    %vm324 = vcmp.eq.s32.totalorder %v113, %v53
    %vm325 = vcmp.eq.s32.totalorder %v117, %v53
    %vm326 = vcmp.eq.s32.totalorder %v121, %v53
    %vm327 = vcmp.eq.s32.totalorder %v125, %v53
    %vm328 = vcmp.eq.s32.totalorder %v129, %v53
    %vm329 = vcmp.eq.s32.totalorder %v133, %v53
    %vm330 = vcmp.eq.s32.totalorder %v137, %v53
    %vm331 = vcmp.eq.s32.totalorder %v141, %v53
    %vm332 = vcmp.eq.s32.totalorder %v145, %v53
    %vm333 = vcmp.eq.s32.totalorder %v149, %v53
    %vm334 = vcmp.eq.s32.totalorder %v153, %v53
    %vm335 = vcmp.eq.s32.totalorder %v157, %v53
    %vm336 = vcmp.eq.s32.totalorder %v161, %v53
    %vm337 = vcmp.eq.s32.totalorder %v165, %v53
    %vm338 = vcmp.eq.s32.totalorder %v169, %v53
    %vm339 = vcmp.eq.s32.totalorder %v173, %v53
    %vm340 = vcmp.eq.s32.totalorder %v177, %v53
    %vm341 = vcmp.eq.s32.totalorder %v181, %v53
    %vm342 = vcmp.eq.s32.totalorder %v185, %v53
    %vm343 = vcmp.eq.s32.totalorder %v189, %v53
    %vm344 = vcmp.eq.s32.totalorder %v193, %v53
    %vm345 = vcmp.eq.s32.totalorder %v197, %v53
    %vm346 = vcmp.eq.s32.totalorder %v201, %v53
    %vm347 = vcmp.eq.s32.totalorder %v205, %v53
    %vm348 = vcmp.eq.s32.totalorder %v209, %v53
    %vm349 = vcmp.eq.s32.totalorder %v213, %v53
    %vm350 = vcmp.eq.s32.totalorder %v217, %v53
    %vm351 = vcmp.eq.s32.totalorder %v221, %v53
    %vm352 = vcmp.eq.s32.totalorder %v225, %v53
    %vm353 = vcmp.eq.s32.totalorder %v229, %v53
    %vm354 = vcmp.eq.s32.totalorder %v233, %v53
    %vm355 = vcmp.eq.s32.totalorder %v237, %v53
    %vm356 = vcmp.eq.s32.totalorder %v241, %v53
    %vm357 = vcmp.eq.s32.totalorder %v245, %v53
    %vm358 = vcmp.eq.s32.totalorder %v249, %v53
    %vm359 = vcmp.eq.s32.totalorder %v253, %v53
    %vm360 = vcmp.eq.s32.totalorder %v257, %v53
    %vm361 = vcmp.eq.s32.totalorder %v261, %v53
    %vm362 = vcmp.eq.s32.totalorder %v265, %v53
    %vm363 = vcmp.eq.s32.totalorder %v269, %v53
    %vm364 = vcmp.eq.s32.totalorder %v273, %v53
    %vm365 = vcmp.eq.s32.totalorder %v277, %v53
    %vm366 = vcmp.eq.s32.totalorder %v281, %v53
    %vm367 = vcmp.eq.s32.totalorder %v285, %v53
    %vm368 = vcmp.eq.s32.totalorder %v289, %v53
    %vm369 = vcmp.eq.s32.totalorder %v293, %v53
    %vm370 = vcmp.eq.s32.totalorder %v297, %v53
    %vm371 = vcmp.eq.s32.totalorder %v301, %v53
    %vm372 = vcmp.eq.s32.totalorder %v305, %v53
    %vm373 = vcmp.eq.s32.totalorder %v309, %v53
    %v374 = vsel %vm310, 1, 0
    %v375 = vsel %vm311, 1, 0
    %v376 = vsel %vm312, 1, 0
    %v377 = vsel %vm313, 1, 0
    %v378 = vsel %vm314, 1, 0
    %v379 = vsel %vm315, 1, 0
    %v380 = vsel %vm316, 1, 0
    %v381 = vsel %vm317, 1, 0
    %v382 = vsel %vm318, 1, 0
    %v383 = vsel %vm319, 1, 0
    %v384 = vsel %vm320, 1, 0
    %v385 = vsel %vm321, 1, 0
    %v386 = vsel %vm322, 1, 0
    %v387 = vsel %vm323, 1, 0
    %v388 = vsel %vm324, 1, 0
    %v389 = vsel %vm325, 1, 0
    %v390 = vsel %vm326, 1, 0
    %v391 = vsel %vm327, 1, 0
    %v392 = vsel %vm328, 1, 0
    %v393 = vsel %vm329, 1, 0
    %v394 = vsel %vm330, 1, 0
    %v395 = vsel %vm331, 1, 0
    %v396 = vsel %vm332, 1, 0
    %v397 = vsel %vm333, 1, 0
    %v398 = vsel %vm334, 1, 0
    %v399 = vsel %vm335, 1, 0
    %v400 = vsel %vm336, 1, 0
    %v401 = vsel %vm337, 1, 0
    %v402 = vsel %vm338, 1, 0
    %v403 = vsel %vm339, 1, 0
    %v404 = vsel %vm340, 1, 0
    %v405 = vsel %vm341, 1, 0
    %v406 = vsel %vm342, 1, 0
    %v407 = vsel %vm343, 1, 0
    %v408 = vsel %vm344, 1, 0
    %v409 = vsel %vm345, 1, 0
    %v410 = vsel %vm346, 1, 0
    %v411 = vsel %vm347, 1, 0
    %v412 = vsel %vm348, 1, 0
    %v413 = vsel %vm349, 1, 0
    %v414 = vsel %vm350, 1, 0
    %v415 = vsel %vm351, 1, 0
    %v416 = vsel %vm352, 1, 0
    %v417 = vsel %vm353, 1, 0
    %v418 = vsel %vm354, 1, 0
    %v419 = vsel %vm355, 1, 0
    %v420 = vsel %vm356, 1, 0
    %v421 = vsel %vm357, 1, 0
    %v422 = vsel %vm358, 1, 0
    %v423 = vsel %vm359, 1, 0
    %v424 = vsel %vm360, 1, 0
    %v425 = vsel %vm361, 1, 0
    %v426 = vsel %vm362, 1, 0
    %v427 = vsel %vm363, 1, 0
    %v428 = vsel %vm364, 1, 0
    %v429 = vsel %vm365, 1, 0
    %v430 = vsel %vm366, 1, 0
    %v431 = vsel %vm367, 1, 0
    %v432 = vsel %vm368, 1, 0
    %v433 = vsel %vm369, 1, 0
    %v434 = vsel %vm370, 1, 0
    %v435 = vsel %vm371, 1, 0
    %v436 = vsel %vm372, 1, 0
    %v437 = vsel %vm373, 1, 0
    %v438 = vcvt.s32.f32 %v374
    %v439 = vcvt.s32.f32 %v375
    %v440 = vcvt.s32.f32 %v376
    %v441 = vcvt.s32.f32 %v377
    %v442 = vcvt.s32.f32 %v378
    %v443 = vcvt.s32.f32 %v379
    %v444 = vcvt.s32.f32 %v380
    %v445 = vcvt.s32.f32 %v381
    %v446 = vcvt.s32.f32 %v382
    %v447 = vcvt.s32.f32 %v383
    %v448 = vcvt.s32.f32 %v384
    %v449 = vcvt.s32.f32 %v385
    %v450 = vcvt.s32.f32 %v386
    %v451 = vcvt.s32.f32 %v387
    %v452 = vcvt.s32.f32 %v388
    %v453 = vcvt.s32.f32 %v389
    %v454 = vcvt.s32.f32 %v390
    %v455 = vcvt.s32.f32 %v391
    %v456 = vcvt.s32.f32 %v392
    %v457 = vcvt.s32.f32 %v393
    %v458 = vcvt.s32.f32 %v394
    %v459 = vcvt.s32.f32 %v395
    %v460 = vcvt.s32.f32 %v396
    %v461 = vcvt.s32.f32 %v397
    %v462 = vcvt.s32.f32 %v398
    %v463 = vcvt.s32.f32 %v399
    %v464 = vcvt.s32.f32 %v400
    %v465 = vcvt.s32.f32 %v401
    %v466 = vcvt.s32.f32 %v402
    %v467 = vcvt.s32.f32 %v403
    %v468 = vcvt.s32.f32 %v404
    %v469 = vcvt.s32.f32 %v405
    %v470 = vcvt.s32.f32 %v406
    %v471 = vcvt.s32.f32 %v407
    %v472 = vcvt.s32.f32 %v408
    %v473 = vcvt.s32.f32 %v409
    %v474 = vcvt.s32.f32 %v410
    %v475 = vcvt.s32.f32 %v411
    %v476 = vcvt.s32.f32 %v412
    %v477 = vcvt.s32.f32 %v413
    %v478 = vcvt.s32.f32 %v414
    %v479 = vcvt.s32.f32 %v415
    %v480 = vcvt.s32.f32 %v416
    %v481 = vcvt.s32.f32 %v417
    %v482 = vcvt.s32.f32 %v418
    %v483 = vcvt.s32.f32 %v419
    %v484 = vcvt.s32.f32 %v420
    %v485 = vcvt.s32.f32 %v421
    %v486 = vcvt.s32.f32 %v422
    %v487 = vcvt.s32.f32 %v423
    %v488 = vcvt.s32.f32 %v424
    %v489 = vcvt.s32.f32 %v425
    %v490 = vcvt.s32.f32 %v426
    %v491 = vcvt.s32.f32 %v427
    %v492 = vcvt.s32.f32 %v428
    %v493 = vcvt.s32.f32 %v429
    %v494 = vcvt.s32.f32 %v430
    %v495 = vcvt.s32.f32 %v431
    %v496 = vcvt.s32.f32 %v432
    %v497 = vcvt.s32.f32 %v433
    %v498 = vcvt.s32.f32 %v434
    %v499 = vcvt.s32.f32 %v435
    %v500 = vcvt.s32.f32 %v436
    %v501 = vcvt.s32.f32 %v437
    %v566 = vcombine.low %v438, %v439
    %v567 = vcombine.low %v440, %v441
    %v568 = vcombine.low %v442, %v443
    %v569 = vcombine.low %v444, %v445
    %v570 = vcombine.low %v446, %v447
    %v571 = vcombine.low %v448, %v449
    %v572 = vcombine.low %v450, %v451
    %v573 = vcombine.low %v452, %v453
    %v574 = vcombine.low %v454, %v455
    %v575 = vcombine.low %v456, %v457
    %v576 = vcombine.low %v458, %v459
    %v577 = vcombine.low %v460, %v461
    %v578 = vcombine.low %v462, %v463
    %v579 = vcombine.low %v464, %v465
    %v580 = vcombine.low %v466, %v467
    %v581 = vcombine.low %v468, %v469
    %v582 = vcombine.low %v470, %v471
    %v583 = vcombine.low %v472, %v473
    %v584 = vcombine.low %v474, %v475
    %v585 = vcombine.low %v476, %v477
    %v586 = vcombine.low %v478, %v479
    %v587 = vcombine.low %v480, %v481
    %v588 = vcombine.low %v482, %v483
    %v589 = vcombine.low %v484, %v485
    %v590 = vcombine.low %v486, %v487
    %v591 = vcombine.low %v488, %v489
    %v592 = vcombine.low %v490, %v491
    %v593 = vcombine.low %v492, %v493
    %v594 = vcombine.low %v494, %v495
    %v595 = vcombine.low %v496, %v497
    %v596 = vcombine.low %v498, %v499
    %v597 = vcombine.low %v500, %v501
    %v630 = vmul.f32 %v12, %v566
    %v631 = vmul.f32 %v13, %v567
    %v632 = vmul.f32 %v14, %v568
    %v633 = vmul.f32 %v15, %v569
    %v634 = vmul.f32 %v16, %v570
    %v635 = vmul.f32 %v17, %v571
    %v636 = vmul.f32 %v18, %v572
    %v637 = vmul.f32 %v19, %v573
    %v638 = vmul.f32 %v20, %v574
    %v639 = vmul.f32 %v21, %v575
    %v640 = vmul.f32 %v22, %v576
    %v641 = vmul.f32 %v23, %v577
    %v642 = vmul.f32 %v24, %v578
    %v643 = vmul.f32 %v25, %v579
    %v644 = vmul.f32 %v26, %v580
    %v645 = vmul.f32 %v27, %v581
    %v646 = vmul.f32 %v28, %v582
    %v647 = vmul.f32 %v29, %v583
    %v648 = vmul.f32 %v30, %v584
    %v649 = vmul.f32 %v31, %v585
    %v650 = vmul.f32 %v32, %v586
    %v651 = vmul.f32 %v33, %v587
    %v652 = vmul.f32 %v34, %v588
    %v653 = vmul.f32 %v35, %v589
    %v654 = vmul.f32 %v36, %v590
    %v655 = vmul.f32 %v37, %v591
    %v656 = vmul.f32 %v38, %v592
    %v657 = vmul.f32 %v39, %v593
    %v658 = vmul.f32 %v40, %v594
    %v659 = vmul.f32 %v41, %v595
    %v660 = vmul.f32 %v42, %v596
    %v661 = vmul.f32 %v43, %v597
    %v694 = vcombine.high %v630, %v630
    %v695 = vcombine.high %v631, %v631
    %v696 = vcombine.high %v632, %v632
    %v697 = vcombine.high %v633, %v633
    %v698 = vcombine.high %v634, %v634
    %v699 = vcombine.high %v635, %v635
    %v700 = vcombine.high %v636, %v636
    %v701 = vcombine.high %v637, %v637
    %v702 = vcombine.high %v638, %v638
    %v703 = vcombine.high %v639, %v639
    %v704 = vcombine.high %v640, %v640
    %v705 = vcombine.high %v641, %v641
    %v706 = vcombine.high %v642, %v642
    %v707 = vcombine.high %v643, %v643
    %v708 = vcombine.high %v644, %v644
    %v709 = vcombine.high %v645, %v645
    %v710 = vcombine.high %v646, %v646
    %v711 = vcombine.high %v647, %v647
    %v712 = vcombine.high %v648, %v648
    %v713 = vcombine.high %v649, %v649
    %v714 = vcombine.high %v650, %v650
    %v715 = vcombine.high %v651, %v651
    %v716 = vcombine.high %v652, %v652
    %v717 = vcombine.high %v653, %v653
    %v718 = vcombine.high %v654, %v654
    %v719 = vcombine.high %v655, %v655
    %v720 = vcombine.high %v656, %v656
    %v721 = vcombine.high %v657, %v657
    %v722 = vcombine.high %v658, %v658
    %v723 = vcombine.high %v659, %v659
    %v724 = vcombine.high %v660, %v660
    %v725 = vcombine.high %v661, %v661
    %vm758 = vcmask 1043456
    %v759 = vsel %vm758, %v630, 0.0
    %v760 = vsel %vm758, %v694, 0.0
    %v761 = vadd.f32 %v759, %v760
    %v762 = vsel %vm758, %v631, 0.0
    %v763 = vadd.f32 %v761, %v762
    %v764 = vsel %vm758, %v695, 0.0
    %v765 = vadd.f32 %v763, %v764
    %v766 = vsel %vm758, %v632, 0.0
    %v767 = vadd.f32 %v765, %v766
    %v768 = vsel %vm758, %v696, 0.0
    %v769 = vadd.f32 %v767, %v768
    %v770 = vsel %vm758, %v633, 0.0
    %v771 = vadd.f32 %v769, %v770
    %v772 = vsel %vm758, %v697, 0.0
    %v773 = vadd.f32 %v771, %v772
    %v774 = vsel %vm758, %v634, 0.0
    %v775 = vadd.f32 %v773, %v774
    %v776 = vsel %vm758, %v698, 0.0
    %v777 = vadd.f32 %v775, %v776
    %v778 = vsel %vm758, %v635, 0.0
    %v779 = vadd.f32 %v777, %v778
    %v780 = vsel %vm758, %v699, 0.0
    %v781 = vadd.f32 %v779, %v780
    %v782 = vsel %vm758, %v636, 0.0
    %v783 = vadd.f32 %v781, %v782
    %v784 = vsel %vm758, %v700, 0.0
    %v785 = vadd.f32 %v783, %v784
    %v786 = vsel %vm758, %v637, 0.0
    %v787 = vadd.f32 %v785, %v786
    %v788 = vsel %vm758, %v701, 0.0
    %v789 = vadd.f32 %v787, %v788
    %v790 = vsel %vm758, %v638, 0.0
    %v791 = vadd.f32 %v789, %v790
    %v792 = vsel %vm758, %v702, 0.0
    %v793 = vadd.f32 %v791, %v792
    %v794 = vsel %vm758, %v639, 0.0
    %v795 = vadd.f32 %v793, %v794
    %v796 = vsel %vm758, %v703, 0.0
    %v797 = vadd.f32 %v795, %v796
    %v798 = vsel %vm758, %v640, 0.0
    %v799 = vadd.f32 %v797, %v798
    %v800 = vsel %vm758, %v704, 0.0
    %v801 = vadd.f32 %v799, %v800
    %v802 = vsel %vm758, %v641, 0.0
    %v803 = vadd.f32 %v801, %v802
    %v804 = vsel %vm758, %v705, 0.0
    %v805 = vadd.f32 %v803, %v804
    %v806 = vsel %vm758, %v642, 0.0
    %v807 = vadd.f32 %v805, %v806
    %v808 = vsel %vm758, %v706, 0.0
    %v809 = vadd.f32 %v807, %v808
    %v810 = vsel %vm758, %v643, 0.0
    %v811 = vadd.f32 %v809, %v810
    %v812 = vsel %vm758, %v707, 0.0
    %v813 = vadd.f32 %v811, %v812
    %v814 = vsel %vm758, %v644, 0.0
    %v815 = vadd.f32 %v813, %v814
    %v816 = vsel %vm758, %v708, 0.0
    %v817 = vadd.f32 %v815, %v816
    %v818 = vsel %vm758, %v645, 0.0
    %v819 = vadd.f32 %v817, %v818
    %v820 = vsel %vm758, %v709, 0.0
    %v821 = vadd.f32 %v819, %v820
    %822 = vadd.xlane.f32.xlu0 %v821
    %v823 = vpop.xlane.xlu0 %822
    %v824 = vsel %vm758, %v646, 0.0
    %v825 = vsel %vm758, %v710, 0.0
    %v826 = vadd.f32 %v824, %v825
    %v827 = vsel %vm758, %v647, 0.0
    %v828 = vadd.f32 %v826, %v827
    %v829 = vsel %vm758, %v711, 0.0
    %v830 = vadd.f32 %v828, %v829
    %v831 = vsel %vm758, %v648, 0.0
    %v832 = vadd.f32 %v830, %v831
    %v833 = vsel %vm758, %v712, 0.0
    %v834 = vadd.f32 %v832, %v833
    %v835 = vsel %vm758, %v649, 0.0
    %v836 = vadd.f32 %v834, %v835
    %v837 = vsel %vm758, %v713, 0.0
    %v838 = vadd.f32 %v836, %v837
    %v839 = vsel %vm758, %v650, 0.0
    %v840 = vadd.f32 %v838, %v839
    %v841 = vsel %vm758, %v714, 0.0
    %v842 = vadd.f32 %v840, %v841
    %v843 = vsel %vm758, %v651, 0.0
    %v844 = vadd.f32 %v842, %v843
    %v845 = vsel %vm758, %v715, 0.0
    %v846 = vadd.f32 %v844, %v845
    %v847 = vsel %vm758, %v652, 0.0
    %v848 = vadd.f32 %v846, %v847
    %v849 = vsel %vm758, %v716, 0.0
    %v850 = vadd.f32 %v848, %v849
    %v851 = vsel %vm758, %v653, 0.0
    %v852 = vadd.f32 %v850, %v851
    %v853 = vsel %vm758, %v717, 0.0
    %v854 = vadd.f32 %v852, %v853
    %v855 = vsel %vm758, %v654, 0.0
    %v856 = vadd.f32 %v854, %v855
    %v857 = vsel %vm758, %v718, 0.0
    %v858 = vadd.f32 %v856, %v857
    %v859 = vsel %vm758, %v655, 0.0
    %v860 = vadd.f32 %v858, %v859
    %v861 = vsel %vm758, %v719, 0.0
    %v862 = vadd.f32 %v860, %v861
    %v863 = vsel %vm758, %v656, 0.0
    %v864 = vadd.f32 %v862, %v863
    %v865 = vsel %vm758, %v720, 0.0
    %v866 = vadd.f32 %v864, %v865
    %v867 = vsel %vm758, %v657, 0.0
    %v868 = vadd.f32 %v866, %v867
    %v869 = vsel %vm758, %v721, 0.0
    %v870 = vadd.f32 %v868, %v869
    %v871 = vsel %vm758, %v658, 0.0
    %v872 = vadd.f32 %v870, %v871
    %v873 = vsel %vm758, %v722, 0.0
    %v874 = vadd.f32 %v872, %v873
    %v875 = vsel %vm758, %v659, 0.0
    %v876 = vadd.f32 %v874, %v875
    %v877 = vsel %vm758, %v723, 0.0
    %v878 = vadd.f32 %v876, %v877
    %v879 = vsel %vm758, %v660, 0.0
    %v880 = vadd.f32 %v878, %v879
    %v881 = vsel %vm758, %v724, 0.0
    %v882 = vadd.f32 %v880, %v881
    %v883 = vsel %vm758, %v661, 0.0
    %v884 = vadd.f32 %v882, %v883
    %v885 = vsel %vm758, %v725, 0.0
    %v886 = vadd.f32 %v884, %v885
    %887 = vadd.xlane.f32.xlu0 %v886
    %v888 = vpop.xlane.xlu0 %887
    %v889 = vrcp.pop 4096.0
    %v890 = vmul.f32 %v823, %v889
    %v891 = vmul.f32 %v888, %v889
    %v924 = vcombine.high %v12, %v12
    %v925 = vcombine.high %v13, %v13
    %v926 = vcombine.high %v14, %v14
    %v927 = vcombine.high %v15, %v15
    %v928 = vcombine.high %v16, %v16
    %v929 = vcombine.high %v17, %v17
    %v930 = vcombine.high %v18, %v18
    %v931 = vcombine.high %v19, %v19
    %v932 = vcombine.high %v20, %v20
    %v933 = vcombine.high %v21, %v21
    %v934 = vcombine.high %v22, %v22
    %v935 = vcombine.high %v23, %v23
    %v936 = vcombine.high %v24, %v24
    %v937 = vcombine.high %v25, %v25
    %v938 = vcombine.high %v26, %v26
    %v939 = vcombine.high %v27, %v27
    %v940 = vcombine.high %v28, %v28
    %v941 = vcombine.high %v29, %v29
    %v942 = vcombine.high %v30, %v30
    %v943 = vcombine.high %v31, %v31
    %v944 = vcombine.high %v32, %v32
    %v945 = vcombine.high %v33, %v33
    %v946 = vcombine.high %v34, %v34
    %v947 = vcombine.high %v35, %v35
    %v948 = vcombine.high %v36, %v36
    %v949 = vcombine.high %v37, %v37
    %v950 = vcombine.high %v38, %v38
    %v951 = vcombine.high %v39, %v39
    %v952 = vcombine.high %v40, %v40
    %v953 = vcombine.high %v41, %v41
    %v954 = vcombine.high %v42, %v42
    %v955 = vcombine.high %v43, %v43
    %v988 = vsel %vm758, %v12, 0.0
    %v989 = vsel %vm758, %v924, 0.0
    %v990 = vadd.f32 %v988, %v989
    %v991 = vsel %vm758, %v13, 0.0
    %v992 = vadd.f32 %v990, %v991
    %v993 = vsel %vm758, %v925, 0.0
    %v994 = vadd.f32 %v992, %v993
    %v995 = vsel %vm758, %v14, 0.0
    %v996 = vadd.f32 %v994, %v995
    %v997 = vsel %vm758, %v926, 0.0
    %v998 = vadd.f32 %v996, %v997
    %v999 = vsel %vm758, %v15, 0.0
    %v1000 = vadd.f32 %v998, %v999
    %v1001 = vsel %vm758, %v927, 0.0
    %v1002 = vadd.f32 %v1000, %v1001
    %v1003 = vsel %vm758, %v16, 0.0
    %v1004 = vadd.f32 %v1002, %v1003
    %v1005 = vsel %vm758, %v928, 0.0
    %v1006 = vadd.f32 %v1004, %v1005
    %v1007 = vsel %vm758, %v17, 0.0
    %v1008 = vadd.f32 %v1006, %v1007
    %v1009 = vsel %vm758, %v929, 0.0
    %v1010 = vadd.f32 %v1008, %v1009
    %v1011 = vsel %vm758, %v18, 0.0
    %v1012 = vadd.f32 %v1010, %v1011
    %v1013 = vsel %vm758, %v930, 0.0
    %v1014 = vadd.f32 %v1012, %v1013
    %v1015 = vsel %vm758, %v19, 0.0
    %v1016 = vadd.f32 %v1014, %v1015
    %v1017 = vsel %vm758, %v931, 0.0
    %v1018 = vadd.f32 %v1016, %v1017
    %v1019 = vsel %vm758, %v20, 0.0
    %v1020 = vadd.f32 %v1018, %v1019
    %v1021 = vsel %vm758, %v932, 0.0
    %v1022 = vadd.f32 %v1020, %v1021
    %v1023 = vsel %vm758, %v21, 0.0
    %v1024 = vadd.f32 %v1022, %v1023
    %v1025 = vsel %vm758, %v933, 0.0
    %v1026 = vadd.f32 %v1024, %v1025
    %v1027 = vsel %vm758, %v22, 0.0
    %v1028 = vadd.f32 %v1026, %v1027
    %v1029 = vsel %vm758, %v934, 0.0
    %v1030 = vadd.f32 %v1028, %v1029
    %v1031 = vsel %vm758, %v23, 0.0
    %v1032 = vadd.f32 %v1030, %v1031
    %v1033 = vsel %vm758, %v935, 0.0
    %v1034 = vadd.f32 %v1032, %v1033
    %v1035 = vsel %vm758, %v24, 0.0
    %v1036 = vadd.f32 %v1034, %v1035
    %v1037 = vsel %vm758, %v936, 0.0
    %v1038 = vadd.f32 %v1036, %v1037
    %v1039 = vsel %vm758, %v25, 0.0
    %v1040 = vadd.f32 %v1038, %v1039
    %v1041 = vsel %vm758, %v937, 0.0
    %v1042 = vadd.f32 %v1040, %v1041
    %v1043 = vsel %vm758, %v26, 0.0
    %v1044 = vadd.f32 %v1042, %v1043
    %v1045 = vsel %vm758, %v938, 0.0
    %v1046 = vadd.f32 %v1044, %v1045
    %v1047 = vsel %vm758, %v27, 0.0
    %v1048 = vadd.f32 %v1046, %v1047
    %v1049 = vsel %vm758, %v939, 0.0
    %v1050 = vadd.f32 %v1048, %v1049
    %1051 = vadd.xlane.f32.xlu0 %v1050
    %v1052 = vpop.xlane.xlu0 %1051
    %v1053 = vsel %vm758, %v28, 0.0
    %v1054 = vsel %vm758, %v940, 0.0
    %v1055 = vadd.f32 %v1053, %v1054
    %v1056 = vsel %vm758, %v29, 0.0
    %v1057 = vadd.f32 %v1055, %v1056
    %v1058 = vsel %vm758, %v941, 0.0
    %v1059 = vadd.f32 %v1057, %v1058
    %v1060 = vsel %vm758, %v30, 0.0
    %v1061 = vadd.f32 %v1059, %v1060
    %v1062 = vsel %vm758, %v942, 0.0
    %v1063 = vadd.f32 %v1061, %v1062
    %v1064 = vsel %vm758, %v31, 0.0
    %v1065 = vadd.f32 %v1063, %v1064
    %v1066 = vsel %vm758, %v943, 0.0
    %v1067 = vadd.f32 %v1065, %v1066
    %v1068 = vsel %vm758, %v32, 0.0
    %v1069 = vadd.f32 %v1067, %v1068
    %v1070 = vsel %vm758, %v944, 0.0
    %v1071 = vadd.f32 %v1069, %v1070
    %v1072 = vsel %vm758, %v33, 0.0
    %v1073 = vadd.f32 %v1071, %v1072
    %v1074 = vsel %vm758, %v945, 0.0
    %v1075 = vadd.f32 %v1073, %v1074
    %v1076 = vsel %vm758, %v34, 0.0
    %v1077 = vadd.f32 %v1075, %v1076
    %v1078 = vsel %vm758, %v946, 0.0
    %v1079 = vadd.f32 %v1077, %v1078
    %v1080 = vsel %vm758, %v35, 0.0
    %v1081 = vadd.f32 %v1079, %v1080
    %v1082 = vsel %vm758, %v947, 0.0
    %v1083 = vadd.f32 %v1081, %v1082
    %v1084 = vsel %vm758, %v36, 0.0
    %v1085 = vadd.f32 %v1083, %v1084
    %v1086 = vsel %vm758, %v948, 0.0
    %v1087 = vadd.f32 %v1085, %v1086
    %v1088 = vsel %vm758, %v37, 0.0
    %v1089 = vadd.f32 %v1087, %v1088
    %v1090 = vsel %vm758, %v949, 0.0
    %v1091 = vadd.f32 %v1089, %v1090
    %v1092 = vsel %vm758, %v38, 0.0
    %v1093 = vadd.f32 %v1091, %v1092
    %v1094 = vsel %vm758, %v950, 0.0
    %v1095 = vadd.f32 %v1093, %v1094
    %v1096 = vsel %vm758, %v39, 0.0
    %v1097 = vadd.f32 %v1095, %v1096
    %v1098 = vsel %vm758, %v951, 0.0
    %v1099 = vadd.f32 %v1097, %v1098
    %v1100 = vsel %vm758, %v40, 0.0
    %v1101 = vadd.f32 %v1099, %v1100
    %v1102 = vsel %vm758, %v952, 0.0
    %v1103 = vadd.f32 %v1101, %v1102
    %v1104 = vsel %vm758, %v41, 0.0
    %v1105 = vadd.f32 %v1103, %v1104
    %v1106 = vsel %vm758, %v953, 0.0
    %v1107 = vadd.f32 %v1105, %v1106
    %v1108 = vsel %vm758, %v42, 0.0
    %v1109 = vadd.f32 %v1107, %v1108
    %v1110 = vsel %vm758, %v954, 0.0
    %v1111 = vadd.f32 %v1109, %v1110
    %v1112 = vsel %vm758, %v43, 0.0
    %v1113 = vadd.f32 %v1111, %v1112
    %v1114 = vsel %vm758, %v955, 0.0
    %v1115 = vadd.f32 %v1113, %v1114
    %1116 = vadd.xlane.f32.xlu0 %v1115
    %v1117 = vpop.xlane.xlu0 %1116
    %v1118 = vmul.f32 %v1052, %v889
    %v1119 = vmul.f32 %v1117, %v889
    %v1120 = vsel %vm758, %v438, 0.0
    %v1121 = vsel %vm758, %v439, 0.0
    %v1122 = vadd.f32 %v1120, %v1121
    %v1123 = vsel %vm758, %v440, 0.0
    %v1124 = vadd.f32 %v1122, %v1123
    %v1125 = vsel %vm758, %v441, 0.0
    %v1126 = vadd.f32 %v1124, %v1125
    %v1127 = vsel %vm758, %v442, 0.0
    %v1128 = vadd.f32 %v1126, %v1127
    %v1129 = vsel %vm758, %v443, 0.0
    %v1130 = vadd.f32 %v1128, %v1129
    %v1131 = vsel %vm758, %v444, 0.0
    %v1132 = vadd.f32 %v1130, %v1131
    %v1133 = vsel %vm758, %v445, 0.0
    %v1134 = vadd.f32 %v1132, %v1133
    %v1135 = vsel %vm758, %v446, 0.0
    %v1136 = vadd.f32 %v1134, %v1135
    %v1137 = vsel %vm758, %v447, 0.0
    %v1138 = vadd.f32 %v1136, %v1137
    %v1139 = vsel %vm758, %v448, 0.0
    %v1140 = vadd.f32 %v1138, %v1139
    %v1141 = vsel %vm758, %v449, 0.0
    %v1142 = vadd.f32 %v1140, %v1141
    %v1143 = vsel %vm758, %v450, 0.0
    %v1144 = vadd.f32 %v1142, %v1143
    %v1145 = vsel %vm758, %v451, 0.0
    %v1146 = vadd.f32 %v1144, %v1145
    %v1147 = vsel %vm758, %v452, 0.0
    %v1148 = vadd.f32 %v1146, %v1147
    %v1149 = vsel %vm758, %v453, 0.0
    %v1150 = vadd.f32 %v1148, %v1149
    %v1151 = vsel %vm758, %v454, 0.0
    %v1152 = vadd.f32 %v1150, %v1151
    %v1153 = vsel %vm758, %v455, 0.0
    %v1154 = vadd.f32 %v1152, %v1153
    %v1155 = vsel %vm758, %v456, 0.0
    %v1156 = vadd.f32 %v1154, %v1155
    %v1157 = vsel %vm758, %v457, 0.0
    %v1158 = vadd.f32 %v1156, %v1157
    %v1159 = vsel %vm758, %v458, 0.0
    %v1160 = vadd.f32 %v1158, %v1159
    %v1161 = vsel %vm758, %v459, 0.0
    %v1162 = vadd.f32 %v1160, %v1161
    %v1163 = vsel %vm758, %v460, 0.0
    %v1164 = vadd.f32 %v1162, %v1163
    %v1165 = vsel %vm758, %v461, 0.0
    %v1166 = vadd.f32 %v1164, %v1165
    %v1167 = vsel %vm758, %v462, 0.0
    %v1168 = vadd.f32 %v1166, %v1167
    %v1169 = vsel %vm758, %v463, 0.0
    %v1170 = vadd.f32 %v1168, %v1169
    %v1171 = vsel %vm758, %v464, 0.0
    %v1172 = vadd.f32 %v1170, %v1171
    %v1173 = vsel %vm758, %v465, 0.0
    %v1174 = vadd.f32 %v1172, %v1173
    %v1175 = vsel %vm758, %v466, 0.0
    %v1176 = vadd.f32 %v1174, %v1175
    %v1177 = vsel %vm758, %v467, 0.0
    %v1178 = vadd.f32 %v1176, %v1177
    %v1179 = vsel %vm758, %v468, 0.0
    %v1180 = vadd.f32 %v1178, %v1179
    %v1181 = vsel %vm758, %v469, 0.0
    %v1182 = vadd.f32 %v1180, %v1181
    %1183 = vadd.xlane.f32.xlu0 %v1182
    %v1184 = vpop.xlane.xlu0 %1183
    %v1185 = vsel %vm758, %v470, 0.0
    %v1186 = vsel %vm758, %v471, 0.0
    %v1187 = vadd.f32 %v1185, %v1186
    %v1188 = vsel %vm758, %v472, 0.0
    %v1189 = vadd.f32 %v1187, %v1188
    %v1190 = vsel %vm758, %v473, 0.0
    %v1191 = vadd.f32 %v1189, %v1190
    %v1192 = vsel %vm758, %v474, 0.0
    %v1193 = vadd.f32 %v1191, %v1192
    %v1194 = vsel %vm758, %v475, 0.0
    %v1195 = vadd.f32 %v1193, %v1194
    %v1196 = vsel %vm758, %v476, 0.0
    %v1197 = vadd.f32 %v1195, %v1196
    %v1198 = vsel %vm758, %v477, 0.0
    %v1199 = vadd.f32 %v1197, %v1198
    %v1200 = vsel %vm758, %v478, 0.0
    %v1201 = vadd.f32 %v1199, %v1200
    %v1202 = vsel %vm758, %v479, 0.0
    %v1203 = vadd.f32 %v1201, %v1202
    %v1204 = vsel %vm758, %v480, 0.0
    %v1205 = vadd.f32 %v1203, %v1204
    %v1206 = vsel %vm758, %v481, 0.0
    %v1207 = vadd.f32 %v1205, %v1206
    %v1208 = vsel %vm758, %v482, 0.0
    %v1209 = vadd.f32 %v1207, %v1208
    %v1210 = vsel %vm758, %v483, 0.0
    %v1211 = vadd.f32 %v1209, %v1210
    %v1212 = vsel %vm758, %v484, 0.0
    %v1213 = vadd.f32 %v1211, %v1212
    %v1214 = vsel %vm758, %v485, 0.0
    %v1215 = vadd.f32 %v1213, %v1214
    %v1216 = vsel %vm758, %v486, 0.0
    %v1217 = vadd.f32 %v1215, %v1216
    %v1218 = vsel %vm758, %v487, 0.0
    %v1219 = vadd.f32 %v1217, %v1218
    %v1220 = vsel %vm758, %v488, 0.0
    %v1221 = vadd.f32 %v1219, %v1220
    %v1222 = vsel %vm758, %v489, 0.0
    %v1223 = vadd.f32 %v1221, %v1222
    %v1224 = vsel %vm758, %v490, 0.0
    %v1225 = vadd.f32 %v1223, %v1224
    %v1226 = vsel %vm758, %v491, 0.0
    %v1227 = vadd.f32 %v1225, %v1226
    %v1228 = vsel %vm758, %v492, 0.0
    %v1229 = vadd.f32 %v1227, %v1228
    %v1230 = vsel %vm758, %v493, 0.0
    %v1231 = vadd.f32 %v1229, %v1230
    %v1232 = vsel %vm758, %v494, 0.0
    %v1233 = vadd.f32 %v1231, %v1232
    %v1234 = vsel %vm758, %v495, 0.0
    %v1235 = vadd.f32 %v1233, %v1234
    %v1236 = vsel %vm758, %v496, 0.0
    %v1237 = vadd.f32 %v1235, %v1236
    %v1238 = vsel %vm758, %v497, 0.0
    %v1239 = vadd.f32 %v1237, %v1238
    %v1240 = vsel %vm758, %v498, 0.0
    %v1241 = vadd.f32 %v1239, %v1240
    %v1242 = vsel %vm758, %v499, 0.0
    %v1243 = vadd.f32 %v1241, %v1242
    %v1244 = vsel %vm758, %v500, 0.0
    %v1245 = vadd.f32 %v1243, %v1244
    %v1246 = vsel %vm758, %v501, 0.0
    %v1247 = vadd.f32 %v1245, %v1246
    %1248 = vadd.xlane.f32.xlu0 %v1247
    %v1249 = vpop.xlane.xlu0 %1248
    %v1250 = vmul.f32 %v1184, %v889
    %v1251 = vmul.f32 %v1249, %v889
    %v1252 = vsub.f32 %v1118, %v890
    %v1253 = vsub.f32 %v1119, %v891
    %v1254 = vsub.f32 %v1250, %v890
    %v1255 = vsub.f32 %v1251, %v891
    %v1256 = vadd.f32 %v1252, 1e-08
    %v1257 = vadd.f32 %v1253, 1e-08
    %v1258 = vadd.f32 %v1252, %v1254
    %v1259 = vadd.f32 %v1253, %v1255
    %v1260 = vadd.f32 %v1258, 1e-08
    %v1261 = vadd.f32 %v1259, 1e-08
    %v1262 = vrcp.pop %v1260
    %v1263 = vmul.f32 %v1256, %v1262
    %v1264 = vrcp.pop %v1261
    %v1265 = vmul.f32 %v1257, %v1264
    %v1266 = vmul.f32 %v1263, 0.4
    %v1267 = vmul.f32 %v1265, 0.4
    %v1268 = vadd.f32 %v1266, 0.3
    %v1269 = vadd.f32 %v1267, 0.3
    %v1270 = vadd.f32 %v1254, 1e-08
    %v1271 = vadd.f32 %v1255, 1e-08
    %v1272 = vmul.f32 %v1270, %v1262
    %v1273 = vmul.f32 %v1271, %v1264
    %v1274 = vmul.f32 %v1272, 0.4
    %v1275 = vmul.f32 %v1273, 0.4
    %v1276 = vadd.f32 %v1274, 0.3
    %v1277 = vadd.f32 %v1275, 0.3
    %v1278 = vadd.f32 %v890, 1e-08
    %v1279 = vadd.f32 %v891, 1e-08
    %v1280 = vmul.f32 %v1268, %v1252
    %v1281 = vmul.f32 %v1269, %v1253
    %v1282 = vadd.f32 %v890, %v1280
    %v1283 = vadd.f32 %v891, %v1281
    %v1284 = vmul.f32 %v1276, %v1254
    %v1285 = vmul.f32 %v1277, %v1255
    %v1286 = vadd.f32 %v1282, %v1284
    %v1287 = vadd.f32 %v1283, %v1285
    %v1288 = vadd.f32 %v1286, 1e-08
    %v1289 = vadd.f32 %v1287, 1e-08
    %v1290 = vrcp.pop %v1288
    %v1291 = vmul.f32 %v1278, %v1290
    %v1292 = vrcp.pop %v1289
    %v1293 = vmul.f32 %v1279, %v1292
    %v1296 = vlaneseq
    %v1297 = vand.u32 %v1296, 127
    %v1298 = vlaneseq
    %v1299 = vshrl.u32 %v1298, 7
    %v1300 = vsub.s32 %v1297, %v1299
    %v1301 = vrot.slane %v1291, %v1300
    %v1302 = vlaneseq
    %v1303 = vshrl.u32 %v1302, 7
    %v1304 = vsub.s32 %v1297, %v1303
    %v1305 = vrot.slane %v1293, %v1304
    %vm1306 = vcmask 1041409
    %v1307 = vsel %vm1306, %v1305, %v1301
    %vm1309 = vcmask 25600
    %v1310 = vsel %vm1309, %v1307, 0.0
    %1311 = vadd.xlane.f32.xlu0 %v1310
    %v1312 = vpop.xlane.xlu0 %1311
    %vm1313 = vcmask 1041408
    %v1314 = vsel %vm1313, %v1312, 0.0
    %v1315 = vrot.slane %v1314, 4
    %v1316 = vadd.f32 %v1314, %v1315
    %v1317 = vrot.slane %v1316, 2
    %v1318 = vadd.f32 %v1316, %v1317
    %v1319 = vrot.slane %v1318, 1
    %v1320 = vadd.f32 %v1318, %v1319
    %v1321 = vrcp.pop 8.0
    %v1322 = vmul.f32 %v1320, %v1321
    %v1323 = vsub.f32 0.0, %v1322
    %vm1324 = vcmask 0
    %1325 = vst.msk [vmem:[#allocation2] sm:$0x1] %vm1324, %v1323
    // Predicated region
    $region10: #{tversky_dice_loss.1} parent=1 // pred_check
      _
    $region11: #{tversky_dice_loss.1} parent=1 // pred_check_branch
      %1327 = sbr.rel (0) target = $region13
    $region12: #{tversky_dice_loss.1} parent=1 // pred_region
      %s1329 = ssub.s32 16, 16
      %1330 = vsyncadd [#allocation3], %s1329
      %s1332 = sshll.u32 [#allocation2], 4
      %s1333 = int_to_ptr.vmem [resolvable:$true] %s1332
      %1335 = dma.vmem_to_hbm [thread:$0]  %s1333, 16, %s2, [#allocation3]
    $region13: #{tversky_dice_loss.1} parent=1 // pred_fallthru
      _
    // Predicated region
    $region14: #{tversky_dice_loss.1} parent=1 // pred_check
      _
    $region15: #{tversky_dice_loss.1} parent=1 // pred_check_branch
      %1337 = sbr.rel (0) target = $region17
    $region16: #{tversky_dice_loss.1} parent=1 // pred_region
      %1338 = dma.done [#allocation3], 16
    $region17: #{tversky_dice_loss.1} parent=1 // pred_fallthru
      _
    %1339 = vsyncpa [#allocation3], 1

</llo_original>
